<compile_context>
chip_gen: v7x
topology: tpu7x:2x2x1
jax: 0.10.0
libtpu: 0.0.40
codegen_flags: <defaults>
</compile_context>

<pallas_src>
import numpy as np
import jax
import jax.numpy as jnp
from jax import lax
from jax.experimental import pallas as pl
from jax.experimental.pallas import tpu as pltpu


SUB_ROWS = 256   # rows per inner sub-chunk (MXU/EUP interleave granule)
ROW_ALIGN = 16   # bf16 sublane granule for batch-tile row counts


# ----------------------------- Pallas kernel --------------------------------
def cryptonet_kernel(x_ref, w0_ref, b0_ref, w1t_ref, b1_ref, w2t_ref, b2_ref, o_ref):
    rows = x_ref.shape[0]
    sub = min(SUB_ROWS, rows)
    n_sub = rows // sub                      # wrapper guarantees divisibility

    # Resident weights (constant index_maps): read once per grid step.
    w0 = w0_ref[...]      # (64, 256)  bf16   folded conv, lane-padded
    b0 = b0_ref[...]      # (1, 256)   f32
    w1t = w1t_ref[...]    # (256, 64)  bf16   fc1.weight^T, zero-padded rows
    b1 = b1_ref[...]      # (1, 64)    f32
    w2t = w2t_ref[...]    # (64, 10)   bf16   fc2.weight^T
    b2 = b2_ref[...]      # (1, 10)    f32

    def body(i, carry):
        r0 = pl.multiple_of(i * sub, sub)
        x = x_ref[pl.ds(r0, sub), :]                                        # (sub, 64) bf16

        # conv (folded) + bias; sigmoid via single-EUP-op tanh identity (exact).
        z0 = jnp.dot(x, w0, preferred_element_type=jnp.float32) + b0        # (sub, 256) f32
        a0 = (0.5 * jnp.tanh(0.5 * z0) + 0.5).astype(jnp.bfloat16)

        # fc1 (+ sigmoid); padded rows of w1t are zero so padded lanes of a0 are inert.
        z1 = jnp.dot(a0, w1t, preferred_element_type=jnp.float32) + b1      # (sub, 64) f32
        a1 = (0.5 * jnp.tanh(0.5 * z1) + 0.5).astype(jnp.bfloat16)

        # fc2 (no activation)
        o_ref[pl.ds(r0, sub), :] = (
            jnp.dot(a1, w2t, preferred_element_type=jnp.float32) + b2)      # (sub, 10) f32
        return carry

    # Full unroll: gives the LLO scheduler visibility to interleave MXU/EUP phases
    # across sub-chunks.
    lax.fori_loop(0, n_sub, body, 0, unroll=True)


# ------------------------------- wrapper -------------------------------------
def _round_up(n, m):
    return ((n + m - 1) // m) * m


def _cdiv(a, b):
    return (a + b - 1) // b


def _choose_tile(n, tile_cap):
    # Aim for >=4 grid steps (v7x: 2 TCs x >=2 tiles each), capped at tile_cap.
    t = min(tile_cap, _round_up(_cdiv(n, 4), ROW_ALIGN))
    t = max(t, ROW_ALIGN)
    if t >= SUB_ROWS:
        t = _round_up(t, SUB_ROWS)           # keep sub-chunk divisibility
    return t


def cryptonet_forward_pallas(x_flat, w0p, b0p, w1tp, b1, w2t, b2, *, tile_n=4096):
    """x_flat: (N, 64) f32/bf16.  Weights come pre-folded / pre-padded / pre-transposed."""
    n = x_flat.shape[0]
    tile = _choose_tile(n, tile_n)
    n_pad = _round_up(n, tile)

    x_bf16 = x_flat.astype(jnp.bfloat16)
    if n_pad != n:
        x_bf16 = jnp.pad(x_bf16, ((0, n_pad - n), (0, 0)))
    grid = (n_pad // tile,)

    cost = pl.CostEstimate(
        flops=2 * n_pad * (64 * 256 + 256 * 64 + 64 * 10),
        transcendentals=n_pad * (256 + 64),
        bytes_accessed=n_pad * (64 * 2 + 10 * 4)
        + (64 * 256 + 256 * 64 + 64 * 10) * 2
        + (256 + 64 + 10) * 4,
    )

    out = pl.pallas_call(
        cryptonet_kernel,
        out_shape=jax.ShapeDtypeStruct((n_pad, 10), jnp.float32),
        grid_spec=pltpu.PrefetchScalarGridSpec(
            num_scalar_prefetch=0,
            grid=grid,
            in_specs=[
                pl.BlockSpec((tile, 64), lambda i: (i, 0)),   # x: streamed per batch tile (bf16)
                pl.BlockSpec((64, 256),  lambda i: (0, 0)),   # W0 (folded conv, padded): resident
                pl.BlockSpec((1, 256),   lambda i: (0, 0)),   # b0 (padded): resident
                pl.BlockSpec((256, 64),  lambda i: (0, 0)),   # fc1.weight^T (padded rows): resident
                pl.BlockSpec((1, 64),    lambda i: (0, 0)),   # fc1.bias: resident
                pl.BlockSpec((64, 10),   lambda i: (0, 0)),   # fc2.weight^T: resident
                pl.BlockSpec((1, 10),    lambda i: (0, 0)),   # fc2.bias: resident
            ],
            out_specs=pl.BlockSpec((tile, 10), lambda i: (i, 0)),
        ),
        compiler_params=pltpu.CompilerParams(
            dimension_semantics=("parallel",),                # shard batch tiles across TCs (v7x)
            vmem_limit_bytes=32 * 1024 * 1024,                # raise v5e's 16 MiB scoped default
        ),
        cost_estimate=cost,
    )(x_bf16, w0p, b0p, w1tp, b1, w2t, b2)

    return out[:n]


# ------------------------------ glue / params -------------------------------
def build_conv_equivalent(conv_w, conv_b, pad_to=256):
    """Fold Conv2d(1,5,3,VALID) on 8x8 + (NCHW->NHWC) + flatten(1) into a dense layer,
    zero-padded from width 180 to `pad_to` lanes."""
    conv_w = np.asarray(conv_w, dtype=np.float32)   # (5, 1, 3, 3)
    conv_b = np.asarray(conv_b, dtype=np.float32)   # (5,)
    W = np.zeros((64, pad_to), dtype=np.float32)
    b = np.zeros((pad_to,), dtype=np.float32)
    for h in range(6):
        for w in range(6):
            p = h * 6 + w                            # output spatial position (H, W order)
            for c in range(5):
                col = p * 5 + c                      # NHWC flatten index
                b[col] = conv_b[c]
                for di in range(3):
                    for dj in range(3):
                        W[(h + di) * 8 + (w + dj), col] = conv_w[c, 0, di, dj]
    return jnp.asarray(W), jnp.asarray(b)


def pad_fc1_weight_t(fc1_w, pad_to=256):
    """fc1_w: (64, 180).  Return transposed + zero-padded (pad_to, 64)."""
    w1t = np.zeros((pad_to, 64), dtype=np.float32)
    w1t[:180, :] = np.asarray(fc1_w, dtype=np.float32).T
    return jnp.asarray(w1t)


def init_params(key):
    kcw, kcb, k1w, k1b, k2w, k2b = jax.random.split(key, 6)
    conv_w = jax.random.uniform(kcw, (5, 1, 3, 3), jnp.float32, -1 / 3, 1 / 3)
    conv_b = jax.random.uniform(kcb, (5,), jnp.float32, -1 / 3, 1 / 3)
    s1 = 1.0 / np.sqrt(180.0)
    fc1_w = jax.random.uniform(k1w, (64, 180), jnp.float32, -s1, s1)
    fc1_b = jax.random.uniform(k1b, (64,), jnp.float32, -s1, s1)
    s2 = 1.0 / np.sqrt(64.0)
    fc2_w = jax.random.uniform(k2w, (10, 64), jnp.float32, -s2, s2)
    fc2_b = jax.random.uniform(k2b, (64,), jnp.float32, -s2, s2)  # placeholder, fixed below
    fc2_b = jax.random.uniform(k2b, (10,), jnp.float32, -s2, s2)
    return conv_w, conv_b, fc1_w, fc1_b, fc2_w, fc2_b


def reference_forward(x, conv_w, conv_b, fc1_w, fc1_b, fc2_w, fc2_b):
    """Pure-JAX f32 reference matching the PyTorch forward exactly."""
    y = lax.conv_general_dilated(
        x, conv_w, window_strides=(1, 1), padding="VALID",
        dimension_numbers=("NCHW", "OIHW", "NCHW"))
    y = y + conv_b[None, :, None, None]                           # (N, 5, 6, 6)
    y = jnp.transpose(y, (0, 2, 3, 1)).reshape(x.shape[0], -1)    # (N, 180) NHWC flatten
    y = jax.nn.sigmoid(y)
    y = y @ fc1_w.T + fc1_b
    y = jax.nn.sigmoid(y)
    y = y @ fc2_w.T + fc2_b
    return y


# --------------------------------- main --------------------------------------
if __name__ == "__main__":
    key = jax.random.PRNGKey(0)
    kx, kp = jax.random.split(key)

    conv_w, conv_b, fc1_w, fc1_b, fc2_w, fc2_b = init_params(kp)

    # Glue: fold + lane-pad conv, pad/transpose fc1, transpose fc2; weights to bf16.
    w0p, b0p = build_conv_equivalent(conv_w, conv_b, pad_to=256)   # (64, 256), (256,)
    w1tp = pad_fc1_weight_t(fc1_w, pad_to=256)                     # (256, 64)
    weights = (
        w0p.astype(jnp.bfloat16), b0p.reshape(1, 256),
        w1tp.astype(jnp.bfloat16), fc1_b.reshape(1, 64),
        fc2_w.T.astype(jnp.bfloat16), fc2_b.reshape(1, 10),
    )

    fwd = jax.jit(cryptonet_forward_pallas)

    # Input implied by the module: 180 = 5 * 6 * 6  =>  8x8 single-channel digits.
    # Small batch exercises the single-tile path; the larger one exercises the
    # multi-step parallel grid, row padding, and the unrolled sub-chunk loop.
    for n in (8, 2048):
        kxn = jax.random.fold_in(kx, n)
        x = jax.random.normal(kxn, (n, 1, 8, 8), dtype=jnp.float32)
        out = jax.block_until_ready(fwd(x.reshape(n, 64), *weights))
        ref = reference_forward(x, conv_w, conv_b, fc1_w, fc1_b, fc2_w, fc2_b)
        # Tolerance reflects bf16 MXU operands (f32 accumulation); f32-only version
        # matched at 1e-3.
        np.testing.assert_allclose(np.asarray(out), np.asarray(ref), rtol=2e-2, atol=8e-3)

    print("KERNEL_OK")
</pallas_src>

<mosaic_0001>
module attributes {stable_mosaic.version = 11 : i64} {
  func.func @cryptonet_kernel(%arg0: i32, %arg1: memref<16x64xbf16, #tpu.memory_space<vmem>>, %arg2: memref<64x256xbf16, #tpu.memory_space<vmem>>, %arg3: memref<1x256xf32, #tpu.memory_space<vmem>>, %arg4: memref<256x64xbf16, #tpu.memory_space<vmem>>, %arg5: memref<1x64xf32, #tpu.memory_space<vmem>>, %arg6: memref<64x10xbf16, #tpu.memory_space<vmem>>, %arg7: memref<1x10xf32, #tpu.memory_space<vmem>>, %arg8: memref<16x10xf32, #tpu.memory_space<vmem>>) attributes {dimension_semantics = [#tpu.dimension_semantics<parallel>], iteration_bounds = array<i64: 1>, scalar_prefetch = 0 : i64, scratch_operands = 0 : i64, tpu.core_type = #tpu.core_type<tc>, window_params = [{transform_indices = @transform_0, window_bounds = array<i64: 16, 64>}, {pipeline_mode = #tpu.pipeline_mode<synchronous>, transform_indices = @transform_1, window_bounds = array<i64: 64, 256>}, {pipeline_mode = #tpu.pipeline_mode<synchronous>, transform_indices = @transform_2, window_bounds = array<i64: 1, 256>}, {pipeline_mode = #tpu.pipeline_mode<synchronous>, transform_indices = @transform_3, window_bounds = array<i64: 256, 64>}, {pipeline_mode = #tpu.pipeline_mode<synchronous>, transform_indices = @transform_4, window_bounds = array<i64: 1, 64>}, {pipeline_mode = #tpu.pipeline_mode<synchronous>, transform_indices = @transform_5, window_bounds = array<i64: 64, 10>}, {pipeline_mode = #tpu.pipeline_mode<synchronous>, transform_indices = @transform_6, window_bounds = array<i64: 1, 10>}, {transform_indices = @transform_7, window_bounds = array<i64: 16, 10>}]} {
    %c0 = arith.constant 0 : index
    %c0_0 = arith.constant 0 : index
    %0 = vector.load %arg2[%c0, %c0_0] : memref<64x256xbf16, #tpu.memory_space<vmem>>, vector<64x256xbf16>
    %c0_1 = arith.constant 0 : index
    %c0_2 = arith.constant 0 : index
    %1 = vector.load %arg3[%c0_1, %c0_2] : memref<1x256xf32, #tpu.memory_space<vmem>>, vector<1x256xf32>
    %c0_3 = arith.constant 0 : index
    %c0_4 = arith.constant 0 : index
    %2 = vector.load %arg4[%c0_3, %c0_4] : memref<256x64xbf16, #tpu.memory_space<vmem>>, vector<256x64xbf16>
    %c0_5 = arith.constant 0 : index
    %c0_6 = arith.constant 0 : index
    %3 = vector.load %arg5[%c0_5, %c0_6] : memref<1x64xf32, #tpu.memory_space<vmem>>, vector<1x64xf32>
    %c0_7 = arith.constant 0 : index
    %c0_8 = arith.constant 0 : index
    %4 = vector.load %arg6[%c0_7, %c0_8] : memref<64x10xbf16, #tpu.memory_space<vmem>>, vector<64x10xbf16>
    %c0_9 = arith.constant 0 : index
    %c0_10 = arith.constant 0 : index
    %5 = vector.load %arg7[%c0_9, %c0_10] : memref<1x10xf32, #tpu.memory_space<vmem>>, vector<1x10xf32>
    %c0_i32 = arith.constant 0 : i32
    %c16_i32 = arith.constant 16 : i32
    %6 = arith.muli %c0_i32, %c16_i32 : i32
    %7 = tpu.assume_multiple %6, 16 : i32
    %8 = arith.index_cast %7 : i32 to index
    %c0_11 = arith.constant 0 : index
    %9 = vector.load %arg1[%8, %c0_11] : memref<16x64xbf16, #tpu.memory_space<vmem>>, vector<16x64xbf16>
    %cst = arith.constant dense<0.000000e+00> : vector<16x256xf32>
    %10 = tpu.matmul %9, %0, %cst {dimension_numbers = #tpu.dot_dimension_numbers<[1], [0], [0], [1], [0, 0, 1, 1], [], []>} : vector<16x64xbf16>, vector<64x256xbf16>, vector<16x256xf32> -> vector<16x256xf32>
    %11 = vector.broadcast %1 : vector<1x256xf32> to vector<16x256xf32>
    %12 = arith.addf %10, %11 : vector<16x256xf32>
    %cst_12 = arith.constant 5.000000e-01 : f32
    %13 = vector.broadcast %cst_12 : f32 to vector<16x256xf32>
    %14 = arith.mulf %13, %12 : vector<16x256xf32>
    %15 = math.tanh %14 : vector<16x256xf32>
    %cst_13 = arith.constant 5.000000e-01 : f32
    %16 = vector.broadcast %cst_13 : f32 to vector<16x256xf32>
    %17 = arith.mulf %16, %15 : vector<16x256xf32>
    %cst_14 = arith.constant 5.000000e-01 : f32
    %18 = vector.broadcast %cst_14 : f32 to vector<16x256xf32>
    %19 = arith.addf %17, %18 : vector<16x256xf32>
    %20 = arith.truncf %19 : vector<16x256xf32> to vector<16x256xbf16>
    %cst_15 = arith.constant dense<0.000000e+00> : vector<16x64xf32>
    %21 = tpu.matmul %20, %2, %cst_15 {dimension_numbers = #tpu.dot_dimension_numbers<[1], [0], [0], [1], [0, 0, 1, 1], [], []>} : vector<16x256xbf16>, vector<256x64xbf16>, vector<16x64xf32> -> vector<16x64xf32>
    %22 = vector.broadcast %3 : vector<1x64xf32> to vector<16x64xf32>
    %23 = arith.addf %21, %22 : vector<16x64xf32>
    %cst_16 = arith.constant 5.000000e-01 : f32
    %24 = vector.broadcast %cst_16 : f32 to vector<16x64xf32>
    %25 = arith.mulf %24, %23 : vector<16x64xf32>
    %26 = math.tanh %25 : vector<16x64xf32>
    %cst_17 = arith.constant 5.000000e-01 : f32
    %27 = vector.broadcast %cst_17 : f32 to vector<16x64xf32>
    %28 = arith.mulf %27, %26 : vector<16x64xf32>
    %cst_18 = arith.constant 5.000000e-01 : f32
    %29 = vector.broadcast %cst_18 : f32 to vector<16x64xf32>
    %30 = arith.addf %28, %29 : vector<16x64xf32>
    %31 = arith.truncf %30 : vector<16x64xf32> to vector<16x64xbf16>
    %cst_19 = arith.constant dense<0.000000e+00> : vector<16x10xf32>
    %32 = tpu.matmul %31, %4, %cst_19 {dimension_numbers = #tpu.dot_dimension_numbers<[1], [0], [0], [1], [0, 0, 1, 1], [], []>} : vector<16x64xbf16>, vector<64x10xbf16>, vector<16x10xf32> -> vector<16x10xf32>
    %33 = vector.broadcast %5 : vector<1x10xf32> to vector<16x10xf32>
    %34 = arith.addf %32, %33 : vector<16x10xf32>
    %35 = arith.index_cast %7 : i32 to index
    %c0_20 = arith.constant 0 : index
    %36 = vector.load %arg8[%35, %c0_20] : memref<16x10xf32, #tpu.memory_space<vmem>>, vector<16x10xf32>
    tpu.vector_store %arg8[%35, %c0_20], %34 {strides = array<i32>} : memref<16x10xf32, #tpu.memory_space<vmem>>, vector<16x10xf32>,
    %c1_i32 = arith.constant 1 : i32
    return
  }
  func.func @transform_0(%arg0: i32) -> (i32, i32) {
    %c0_i32 = arith.constant 0 : i32
    %c0_i32_0 = arith.constant 0 : i32
    return %arg0, %c0_i32 : i32, i32
  }
  func.func @transform_1(%arg0: i32) -> (i32, i32) {
    %c0_i32 = arith.constant 0 : i32
    %c0_i32_0 = arith.constant 0 : i32
    %c0_i32_1 = arith.constant 0 : i32
    return %c0_i32, %c0_i32_0 : i32, i32
  }
  func.func @transform_2(%arg0: i32) -> (i32, i32) {
    %c0_i32 = arith.constant 0 : i32
    %c0_i32_0 = arith.constant 0 : i32
    %c0_i32_1 = arith.constant 0 : i32
    return %c0_i32, %c0_i32_0 : i32, i32
  }
  func.func @transform_3(%arg0: i32) -> (i32, i32) {
    %c0_i32 = arith.constant 0 : i32
    %c0_i32_0 = arith.constant 0 : i32
    %c0_i32_1 = arith.constant 0 : i32
    return %c0_i32, %c0_i32_0 : i32, i32
  }
  func.func @transform_4(%arg0: i32) -> (i32, i32) {
    %c0_i32 = arith.constant 0 : i32
    %c0_i32_0 = arith.constant 0 : i32
    %c0_i32_1 = arith.constant 0 : i32
    return %c0_i32, %c0_i32_0 : i32, i32
  }
  func.func @transform_5(%arg0: i32) -> (i32, i32) {
    %c0_i32 = arith.constant 0 : i32
    %c0_i32_0 = arith.constant 0 : i32
    %c0_i32_1 = arith.constant 0 : i32
    return %c0_i32, %c0_i32_0 : i32, i32
  }
  func.func @transform_6(%arg0: i32) -> (i32, i32) {
    %c0_i32 = arith.constant 0 : i32
    %c0_i32_0 = arith.constant 0 : i32
    %c0_i32_1 = arith.constant 0 : i32
    return %c0_i32, %c0_i32_0 : i32, i32
  }
  func.func @transform_7(%arg0: i32) -> (i32, i32) {
    %c0_i32 = arith.constant 0 : i32
    %c0_i32_0 = arith.constant 0 : i32
    return %arg0, %c0_i32 : i32, i32
  }
}

</mosaic_0001>

<llo_original>
// kernel: cryptonet_forward_pallas.1
$region0: #{cryptonet_forward_pallas.1}
  #allocation0 [shape = 'u32[]', space=smem, size = 0x4, offset = 0x4, fixed_abs, tag = 'smem constant byte address 0x4 - core index']
  #allocation1 [shape = 'u32[144,128]{1,0:T(1,128)}', space=vmem, size = 0x12000, scoped, tag = 'internal scratch']
  %s0 = inlined_call_operand.vmem [shape: bf16[16,64], index: 0, kind: input, shape index: {}]
  %s1 = inlined_call_operand.vmem [shape: bf16[64,256], index: 1, kind: input, shape index: {}]
  %s2 = inlined_call_operand.vmem [shape: f32[1,256], index: 2, kind: input, shape index: {}]
  %s3 = inlined_call_operand.vmem [shape: bf16[256,64], index: 3, kind: input, shape index: {}]
  %s4 = inlined_call_operand.vmem [shape: f32[1,64], index: 4, kind: input, shape index: {}]
  %s5 = inlined_call_operand.vmem [shape: bf16[64,10], index: 5, kind: input, shape index: {}]
  %s6 = inlined_call_operand.vmem [shape: f32[1,10], index: 6, kind: input, shape index: {}]
  %s7 = inlined_call_operand.vmem [shape: f32[16,10], index: 7, kind: output, shape index: {}]
  %s8 = sld [smem:[#allocation0]]
  $region38: #{cryptonet_forward_pallas.1} parent=0
    _
  %s10 = ssub.s32 1, %s8
  %s11 = scalar_select 0, %s10, %s8
  // Predicated region
  $region2: #{cryptonet_forward_pallas.1} parent=0 // pred_check
    _
  $region3: #{cryptonet_forward_pallas.1} parent=0 // pred_check_branch
    %13 = sbr.rel (0) target = $region5
  $region4: #{cryptonet_forward_pallas.1} parent=0 // pred_region
    _
  $region5: #{cryptonet_forward_pallas.1} parent=0 // pred_fallthru
    _
  // Predicated region
  $region6: #{cryptonet_forward_pallas.1} parent=0 // pred_check
    _
  $region7: #{cryptonet_forward_pallas.1} parent=0 // pred_check_branch
    %15 = sbr.rel (0) target = $region9
  $region8: #{cryptonet_forward_pallas.1} parent=0 // pred_region
    _
  $region9: #{cryptonet_forward_pallas.1} parent=0 // pred_fallthru
    _
  // Predicated region
  $region10: #{cryptonet_forward_pallas.1} parent=0 // pred_check
    _
  $region11: #{cryptonet_forward_pallas.1} parent=0 // pred_check_branch
    %17 = sbr.rel (0) target = $region13
  $region12: #{cryptonet_forward_pallas.1} parent=0 // pred_region
    _
  $region13: #{cryptonet_forward_pallas.1} parent=0 // pred_fallthru
    _
  // Predicated region
  $region14: #{cryptonet_forward_pallas.1} parent=0 // pred_check
    _
  $region15: #{cryptonet_forward_pallas.1} parent=0 // pred_check_branch
    %19 = sbr.rel (0) target = $region17
  $region16: #{cryptonet_forward_pallas.1} parent=0 // pred_region
    _
  $region17: #{cryptonet_forward_pallas.1} parent=0 // pred_fallthru
    _
  // Predicated region
  $region18: #{cryptonet_forward_pallas.1} parent=0 // pred_check
    _
  $region19: #{cryptonet_forward_pallas.1} parent=0 // pred_check_branch
    %21 = sbr.rel (0) target = $region21
  $region20: #{cryptonet_forward_pallas.1} parent=0 // pred_region
    _
  $region21: #{cryptonet_forward_pallas.1} parent=0 // pred_fallthru
    _
  // Predicated region
  $region22: #{cryptonet_forward_pallas.1} parent=0 // pred_check
    _
  $region23: #{cryptonet_forward_pallas.1} parent=0 // pred_check_branch
    %23 = sbr.rel (0) target = $region25
  $region24: #{cryptonet_forward_pallas.1} parent=0 // pred_region
    _
  $region25: #{cryptonet_forward_pallas.1} parent=0 // pred_fallthru
    _
  // Predicated region
  $region26: #{cryptonet_forward_pallas.1} parent=0 // pred_check
    _
  $region27: #{cryptonet_forward_pallas.1} parent=0 // pred_check_branch
    %25 = sbr.rel (0) target = $region29
  $region28: #{cryptonet_forward_pallas.1} parent=0 // pred_region
    _
  $region29: #{cryptonet_forward_pallas.1} parent=0 // pred_fallthru
    _
  %v27 = vld [vmem:[%s1] sm:$0xff]
  %v28 = vld [vmem:[%s1 + $0x8] sm:$0xff]
  %v29 = vld [vmem:[%s1 + $0x10] sm:$0xff]
  %v30 = vld [vmem:[%s1 + $0x18] sm:$0xff]
  %v31 = vld [vmem:[%s1 + $0x20] sm:$0xff]
  %v32 = vld [vmem:[%s1 + $0x28] sm:$0xff]
  %v33 = vld [vmem:[%s1 + $0x30] sm:$0xff]
  %v34 = vld [vmem:[%s1 + $0x38] sm:$0xff]
  %v35 = vld [vmem:[%s2] sm:$0x3]
  %v36 = vld [vmem:[%s3] sm:$0xf]
  %v37 = vld [vmem:[%s3 + $0x4] sm:$0xf]
  %v38 = vld [vmem:[%s3 + $0x8] sm:$0xf]
  %v39 = vld [vmem:[%s3 + $0xc] sm:$0xf]
  %v40 = vld [vmem:[%s3 + $0x10] sm:$0xf]
  %v41 = vld [vmem:[%s3 + $0x14] sm:$0xf]
  %v42 = vld [vmem:[%s3 + $0x18] sm:$0xf]
  %v43 = vld [vmem:[%s3 + $0x1c] sm:$0xf]
  %v44 = vld [vmem:[%s3 + $0x20] sm:$0xf]
  %v45 = vld [vmem:[%s3 + $0x24] sm:$0xf]
  %v46 = vld [vmem:[%s3 + $0x28] sm:$0xf]
  %v47 = vld [vmem:[%s3 + $0x2c] sm:$0xf]
  %v48 = vld [vmem:[%s3 + $0x30] sm:$0xf]
  %v49 = vld [vmem:[%s3 + $0x34] sm:$0xf]
  %v50 = vld [vmem:[%s3 + $0x38] sm:$0xf]
  %v51 = vld [vmem:[%s3 + $0x3c] sm:$0xf]
  %v52 = vld [vmem:[%s3 + $0x40] sm:$0xf]
  %v53 = vld [vmem:[%s3 + $0x44] sm:$0xf]
  %v54 = vld [vmem:[%s3 + $0x48] sm:$0xf]
  %v55 = vld [vmem:[%s3 + $0x4c] sm:$0xf]
  %v56 = vld [vmem:[%s3 + $0x50] sm:$0xf]
  %v57 = vld [vmem:[%s3 + $0x54] sm:$0xf]
  %v58 = vld [vmem:[%s3 + $0x58] sm:$0xf]
  %v59 = vld [vmem:[%s3 + $0x5c] sm:$0xf]
  %v60 = vld [vmem:[%s3 + $0x60] sm:$0xf]
  %v61 = vld [vmem:[%s3 + $0x64] sm:$0xf]
  %v62 = vld [vmem:[%s3 + $0x68] sm:$0xf]
  %v63 = vld [vmem:[%s3 + $0x6c] sm:$0xf]
  %v64 = vld [vmem:[%s3 + $0x70] sm:$0xf]
  %v65 = vld [vmem:[%s3 + $0x74] sm:$0xf]
  %v66 = vld [vmem:[%s3 + $0x78] sm:$0xf]
  %v67 = vld [vmem:[%s3 + $0x7c] sm:$0xf]
  %v68 = vld [vmem:[%s4] sm:$0x1]
  %v69 = vld [vmem:[%s5] sm:$0xf]
  %v70 = vld [vmem:[%s5 + $0x4] sm:$0xf]
  %v71 = vld [vmem:[%s5 + $0x8] sm:$0xf]
  %v72 = vld [vmem:[%s5 + $0xc] sm:$0xf]
  %v73 = vld [vmem:[%s5 + $0x10] sm:$0xf]
  %v74 = vld [vmem:[%s5 + $0x14] sm:$0xf]
  %v75 = vld [vmem:[%s5 + $0x18] sm:$0xf]
  %v76 = vld [vmem:[%s5 + $0x1c] sm:$0xf]
  %v77 = vld [vmem:[%s6] sm:$0x1]
  %v78 = vld [vmem:[%s0] sm:$0xf]
  %v79 = vld [vmem:[%s0 + $0x4] sm:$0xf]
  %v81 = vlaneseq
  %v82 = vshrl.u32 %v81, 7
  %v83 = vsub.s32 0, %v82
  %v84 = vrot.slane %v35, %v83
  %v85 = vlaneseq
  %v86 = vshrl.u32 %v85, 7
  %v87 = vsub.s32 1, %v86
  %v88 = vrot.slane %v35, %v87
  %v93 = vunpack.c.l.b16 %v78
  %v94 = vunpack.c.l.b16 %v79
  %v95 = vpack.c.b16 %v94, %v93
  %v104 = vunpack.c.l.b16 %v27
  %v105 = vunpack.c.h.b16 %v27
  %v106 = vunpack.c.l.b16 %v28
  %v107 = vunpack.c.h.b16 %v28
  %v108 = vunpack.c.l.b16 %v29
  %v109 = vunpack.c.h.b16 %v29
  %v110 = vunpack.c.l.b16 %v30
  %v111 = vunpack.c.h.b16 %v30
  %v112 = vunpack.c.l.b16 %v31
  %v113 = vunpack.c.h.b16 %v31
  %v114 = vunpack.c.l.b16 %v32
  %v115 = vunpack.c.h.b16 %v32
  %v116 = vunpack.c.l.b16 %v33
  %v117 = vunpack.c.h.b16 %v33
  %v118 = vunpack.c.l.b16 %v34
  %v119 = vunpack.c.h.b16 %v34
  %v120 = vpack.c.b16 %v106, %v104
  %v121 = vpack.c.b16 %v107, %v105
  %v122 = vpack.c.b16 %v110, %v108
  %v123 = vpack.c.b16 %v111, %v109
  %v124 = vpack.c.b16 %v114, %v112
  %v125 = vpack.c.b16 %v115, %v113
  %v126 = vpack.c.b16 %v118, %v116
  %v127 = vpack.c.b16 %v119, %v117
  %vm136 = vcmask 523264
  %v138 = vsel %vm136, %v95, 0
  %140 = vmatprep.subr.bf16.mxu0 %v121
  %141 = vmatpush1.bf16.msra.mxu0 %v120
  %142 = vmatprep.subr.bf16.mxu0 %v123
  %143 = vmatpush1.bf16.msra.mxu0 %v122
  %144 = vmatprep.subr.bf16.mxu0 %v125
  %145 = vmatpush1.bf16.msra.mxu0 %v124
  %146 = vmatprep.subr.bf16.mxu0 %v127
  %147 = vmatpush1.bf16.msra.mxu0 %v126
  %148 = vmatprep.subr.bf16.mxu0 0
  %149 = vmatpush1.bf16.msra.mxu0 0
  %150 = vmatprep.subr.bf16.mxu0 0
  %151 = vmatpush1.bf16.msra.mxu0 0
  %152 = vmatprep.subr.bf16.mxu0 0
  %153 = vmatpush1.bf16.msra.mxu0 0
  %154 = vmatprep.subr.bf16.mxu0 0
  %155 = vmatpush1.bf16.msra.mxu0 0
  %156 = vmatprep.subr.bf16.mxu0 0
  %157 = vmatpush1.bf16.msra.mxu0 0
  %158 = vmatprep.subr.bf16.mxu0 0
  %159 = vmatpush1.bf16.msra.mxu0 0
  %160 = vmatprep.subr.bf16.mxu0 0
  %161 = vmatpush1.bf16.msra.mxu0 0
  %162 = vmatprep.subr.bf16.mxu0 0
  %163 = vmatpush1.bf16.msra.mxu0 0
  %164 = vmatprep.subr.bf16.mxu0 0
  %165 = vmatpush1.bf16.msra.mxu0 0
  %166 = vmatprep.subr.bf16.mxu0 0
  %167 = vmatpush1.bf16.msra.mxu0 0
  %168 = vmatprep.subr.bf16.mxu0 0
  %169 = vmatpush1.bf16.msra.mxu0 0
  %170 = vmatprep.subr.bf16.mxu0 0
  %171 = vmatpush1.bf16.msra.mxu0 0
  %172 = vmatprep.mubr.bf16.mxu0 0
  %173 = vmatmul.mubr.bf16.gmra.mrb[0].mxu0 %v138
  %v174 = vpop.f32.mrb[0].mxu0
  %v175 = vadd.f32 %v84, %v174
  %v176 = vpop.f32.mrb[0].mxu0
  %v177 = vadd.f32 %v88, %v176
  %v178 = vpop.f32.mrb[0].mxu0
  %v179 = vadd.f32 %v84, %v178
  %v180 = vpop.f32.mrb[0].mxu0
  %v181 = vadd.f32 %v88, %v180
  %182 = vdwg.mxu0
  %v183 = vmul.f32 %v175, 0.5
  %v184 = vmul.f32 %v177, 0.5
  %v185 = vmul.f32 %v179, 0.5
  %v186 = vmul.f32 %v181, 0.5
  %v187 = vtanh.pop %v183
  %v188 = vtanh.pop %v184
  %v189 = vtanh.pop %v185
  %v190 = vtanh.pop %v186
  %v191 = vmul.f32 %v187, 0.5
  %v192 = vmul.f32 %v188, 0.5
  %v193 = vmul.f32 %v189, 0.5
  %v194 = vmul.f32 %v190, 0.5
  %v195 = vadd.f32 %v191, 0.5
  %v196 = vadd.f32 %v192, 0.5
  %v197 = vadd.f32 %v193, 0.5
  %v198 = vadd.f32 %v194, 0.5
  %v199 = vpack.c.bf16 %v197, %v195
  %v200 = vpack.c.bf16 %v198, %v196
  %v202 = vlaneseq
  %v203 = vshrl.u32 %v202, 7
  %v204 = vsub.s32 0, %v203
  %v205 = vrot.slane %v68, %v204
  %v239 = vunpack.c.l.b16 %v36
  %v240 = vunpack.c.l.b16 %v37
  %v241 = vunpack.c.l.b16 %v38
  %v242 = vunpack.c.l.b16 %v39
  %v243 = vunpack.c.l.b16 %v40
  %v244 = vunpack.c.l.b16 %v41
  %v245 = vunpack.c.l.b16 %v42
  %v246 = vunpack.c.l.b16 %v43
  %v247 = vunpack.c.l.b16 %v44
  %v248 = vunpack.c.l.b16 %v45
  %v249 = vunpack.c.l.b16 %v46
  %v250 = vunpack.c.l.b16 %v47
  %v251 = vunpack.c.l.b16 %v48
  %v252 = vunpack.c.l.b16 %v49
  %v253 = vunpack.c.l.b16 %v50
  %v254 = vunpack.c.l.b16 %v51
  %v255 = vunpack.c.l.b16 %v52
  %v256 = vunpack.c.l.b16 %v53
  %v257 = vunpack.c.l.b16 %v54
  %v258 = vunpack.c.l.b16 %v55
  %v259 = vunpack.c.l.b16 %v56
  %v260 = vunpack.c.l.b16 %v57
  %v261 = vunpack.c.l.b16 %v58
  %v262 = vunpack.c.l.b16 %v59
  %v263 = vunpack.c.l.b16 %v60
  %v264 = vunpack.c.l.b16 %v61
  %v265 = vunpack.c.l.b16 %v62
  %v266 = vunpack.c.l.b16 %v63
  %v267 = vunpack.c.l.b16 %v64
  %v268 = vunpack.c.l.b16 %v65
  %v269 = vunpack.c.l.b16 %v66
  %v270 = vunpack.c.l.b16 %v67
  %v271 = vpack.c.b16 %v240, %v239
  %v272 = vpack.c.b16 %v242, %v241
  %v273 = vpack.c.b16 %v244, %v243
  %v274 = vpack.c.b16 %v246, %v245
  %v275 = vpack.c.b16 %v248, %v247
  %v276 = vpack.c.b16 %v250, %v249
  %v277 = vpack.c.b16 %v252, %v251
  %v278 = vpack.c.b16 %v254, %v253
  %v279 = vpack.c.b16 %v256, %v255
  %v280 = vpack.c.b16 %v258, %v257
  %v281 = vpack.c.b16 %v260, %v259
  %v282 = vpack.c.b16 %v262, %v261
  %v283 = vpack.c.b16 %v264, %v263
  %v284 = vpack.c.b16 %v266, %v265
  %v285 = vpack.c.b16 %v268, %v267
  %v286 = vpack.c.b16 %v270, %v269
  %303 = vmatprep.subr.bf16.mxu0 0
  %304 = vmatpush1.bf16.msra.mxu0 %v271
  %305 = vmatprep.subr.bf16.mxu0 0
  %306 = vmatpush1.bf16.msra.mxu0 %v272
  %307 = vmatprep.subr.bf16.mxu0 0
  %308 = vmatpush1.bf16.msra.mxu0 %v273
  %309 = vmatprep.subr.bf16.mxu0 0
  %310 = vmatpush1.bf16.msra.mxu0 %v274
  %311 = vmatprep.subr.bf16.mxu0 0
  %312 = vmatpush1.bf16.msra.mxu0 %v275
  %313 = vmatprep.subr.bf16.mxu0 0
  %314 = vmatpush1.bf16.msra.mxu0 %v276
  %315 = vmatprep.subr.bf16.mxu0 0
  %316 = vmatpush1.bf16.msra.mxu0 %v277
  %317 = vmatprep.subr.bf16.mxu0 0
  %318 = vmatpush1.bf16.msra.mxu0 %v278
  %319 = vmatprep.subr.bf16.mxu0 0
  %320 = vmatpush1.bf16.msra.mxu0 %v279
  %321 = vmatprep.subr.bf16.mxu0 0
  %322 = vmatpush1.bf16.msra.mxu0 %v280
  %323 = vmatprep.subr.bf16.mxu0 0
  %324 = vmatpush1.bf16.msra.mxu0 %v281
  %325 = vmatprep.subr.bf16.mxu0 0
  %326 = vmatpush1.bf16.msra.mxu0 %v282
  %327 = vmatprep.subr.bf16.mxu0 0
  %328 = vmatpush1.bf16.msra.mxu0 %v283
  %329 = vmatprep.subr.bf16.mxu0 0
  %330 = vmatpush1.bf16.msra.mxu0 %v284
  %331 = vmatprep.subr.bf16.mxu0 0
  %332 = vmatpush1.bf16.msra.mxu0 %v285
  %333 = vmatprep.subr.bf16.mxu0 0
  %334 = vmatpush1.bf16.msra.mxu0 %v286
  %335 = vmatprep.mubr.bf16.mxu0 %v200
  %336 = vmatmul.mubr.bf16.gmra.mrb[0].mxu0 %v199
  %v337 = vpop.f32.mrb[0].mxu0
  %v338 = vadd.f32 %v205, %v337
  %v339 = vpop.f32.mrb[0].mxu0
  %v340 = vpop.f32.mrb[0].mxu0
  %v341 = vadd.f32 %v205, %v340
  %v342 = vpop.f32.mrb[0].mxu0
  %343 = vdwg.mxu0
  %v344 = vmul.f32 %v338, 0.5
  %v345 = vmul.f32 %v341, 0.5
  %v346 = vtanh.pop %v344
  %v347 = vtanh.pop %v345
  %v348 = vmul.f32 %v346, 0.5
  %v349 = vmul.f32 %v347, 0.5
  %v350 = vadd.f32 %v348, 0.5
  %v351 = vadd.f32 %v349, 0.5
  %v352 = vpack.c.bf16 %v351, %v350
  %v354 = vlaneseq
  %v355 = vshrl.u32 %v354, 7
  %v356 = vsub.s32 0, %v355
  %v357 = vrot.slane %v77, %v356
  %v367 = vunpack.c.l.b16 %v69
  %v368 = vunpack.c.l.b16 %v70
  %v369 = vunpack.c.l.b16 %v71
  %v370 = vunpack.c.l.b16 %v72
  %v371 = vunpack.c.l.b16 %v73
  %v372 = vunpack.c.l.b16 %v74
  %v373 = vunpack.c.l.b16 %v75
  %v374 = vunpack.c.l.b16 %v76
  %v375 = vpack.c.b16 %v368, %v367
  %v376 = vpack.c.b16 %v370, %v369
  %v377 = vpack.c.b16 %v372, %v371
  %v378 = vpack.c.b16 %v374, %v373
  %v384 = vsel %vm136, %v352, 0
  %386 = vmatprep.subr.bf16.mxu0 0
  %387 = vmatpush1.bf16.msra.mxu0 %v375
  %388 = vmatprep.subr.bf16.mxu0 0
  %389 = vmatpush1.bf16.msra.mxu0 %v376
  %390 = vmatprep.subr.bf16.mxu0 0
  %391 = vmatpush1.bf16.msra.mxu0 %v377
  %392 = vmatprep.subr.bf16.mxu0 0
  %393 = vmatpush1.bf16.msra.mxu0 %v378
  %394 = vmatprep.subr.bf16.mxu0 0
  %395 = vmatpush1.bf16.msra.mxu0 0
  %396 = vmatprep.subr.bf16.mxu0 0
  %397 = vmatpush1.bf16.msra.mxu0 0
  %398 = vmatprep.subr.bf16.mxu0 0
  %399 = vmatpush1.bf16.msra.mxu0 0
  %400 = vmatprep.subr.bf16.mxu0 0
  %401 = vmatpush1.bf16.msra.mxu0 0
  %402 = vmatprep.subr.bf16.mxu0 0
  %403 = vmatpush1.bf16.msra.mxu0 0
  %404 = vmatprep.subr.bf16.mxu0 0
  %405 = vmatpush1.bf16.msra.mxu0 0
  %406 = vmatprep.subr.bf16.mxu0 0
  %407 = vmatpush1.bf16.msra.mxu0 0
  %408 = vmatprep.subr.bf16.mxu0 0
  %409 = vmatpush1.bf16.msra.mxu0 0
  %410 = vmatprep.subr.bf16.mxu0 0
  %411 = vmatpush1.bf16.msra.mxu0 0
  %412 = vmatprep.subr.bf16.mxu0 0
  %413 = vmatpush1.bf16.msra.mxu0 0
  %414 = vmatprep.subr.bf16.mxu0 0
  %415 = vmatpush1.bf16.msra.mxu0 0
  %416 = vmatprep.subr.bf16.mxu0 0
  %417 = vmatpush1.bf16.msra.mxu0 0
  %418 = vmatprep.mubr.bf16.mxu0 0
  %419 = vmatmul.mubr.bf16.gmra.mrb[0].mxu0 %v384
  %v420 = vpop.f32.mrb[0].mxu0
  %v421 = vadd.f32 %v357, %v420
  %v422 = vpop.f32.mrb[0].mxu0
  %v423 = vpop.f32.mrb[0].mxu0
  %v424 = vadd.f32 %v357, %v423
  %v425 = vpop.f32.mrb[0].mxu0
  %426 = vdwg.mxu0
  %vm427 = vcmask 80896
  %428 = vst.msk [vmem:[%s7] sm:$0xff] %vm427, %v421
  %429 = vst.msk [vmem:[%s7 + $0x8] sm:$0xff] %vm427, %v424
  // Predicated region
  $region30: #{cryptonet_forward_pallas.1} parent=0 // pred_check
    _
  $region31: #{cryptonet_forward_pallas.1} parent=0 // pred_check_branch
    %431 = sbr.rel (0) target = $region33
  $region32: #{cryptonet_forward_pallas.1} parent=0 // pred_region
    _
  $region33: #{cryptonet_forward_pallas.1} parent=0 // pred_fallthru
    _
  // Predicated region
  $region34: #{cryptonet_forward_pallas.1} parent=0 // pred_check
    _
  $region35: #{cryptonet_forward_pallas.1} parent=0 // pred_check_branch
    %433 = sbr.rel (0) target = $region37
  $region36: #{cryptonet_forward_pallas.1} parent=0 // pred_region
    _
  $region37: #{cryptonet_forward_pallas.1} parent=0 // pred_fallthru
    _

</llo_original>
